<compile_context>
chip_gen: v5e
topology: v5e:2x2
jax: 0.10.0
libtpu: 0.0.40
codegen_flags: <defaults>
</compile_context>

<pallas_src>
import jax
import jax.numpy as jnp
from jax.experimental import pallas as pl
from jax.experimental.pallas import tpu as pltpu

LANES = 128
SUBLANES = 8
MAX_BLOCK_ROWS = 4096            # 2 MiB f32 block; 2 bufs x (in + out) = 8 MiB VMEM (< v5e 16 MiB default)
FAST_PATH_MAX_ELEMS = 64 * 1024  # below this, a plain jnp FMA beats dispatch + slab packing


def affine_kernel(ac_ref, x_ref, o_ref):
    # Entire net (eval mode) folded to y = a*x + c: one VPU FMA per element on a
    # lane-dense tile; (a, c) are scalar-prefetched into SMEM.
    o_ref[...] = x_ref[...] * ac_ref[0] + ac_ref[1]


def _fused_affine_coeffs(params):
    """Fold Linear(1,2) -> BN(eval) -> Dropout(identity) -> Linear(2,1) into y = a*x + c.
    Computed once in plain JAX in the wrapper (outside the hot path)."""
    eps = jnp.float32(1e-5)
    scale = params["gamma"] * jax.lax.rsqrt(params["var"] + eps)  # (1, 2)
    w2 = params["w2t"].T                                          # (1, 2)
    a = jnp.sum(params["w1t"] * scale * w2)
    c = (jnp.sum(((params["b1"] - params["mean"]) * scale + params["beta"]) * w2)
         + params["b2"][0, 0])
    return jnp.stack([a, c]).astype(jnp.float32)                  # (2,) -> SMEM


def _choose_block_rows(rows):
    """Largest block <= 2 MiB, a multiple of 8 sublanes, and >= 2 grid blocks whenever
    there is enough work so the 'parallel' batch axis shards across both v7x TCs."""
    if rows <= 2 * SUBLANES:
        return rows                                  # single block == full array dims
    n_blocks = max(2, pl.cdiv(rows, MAX_BLOCK_ROWS))
    block_rows = pl.cdiv(pl.cdiv(rows, n_blocks), SUBLANES) * SUBLANES
    return min(block_rows, MAX_BLOCK_ROWS)


def affine_forward_slab(ac, x2d):
    """y = a*x + c over a lane-dense (rows, 128) f32 slab. Keeping the slab as the
    interchange format avoids any wrapper-side pad/repack HBM round-trips."""
    rows = x2d.shape[0]
    block_rows = _choose_block_rows(rows)
    grid = (pl.cdiv(rows, block_rows),)   # grid may overhang; Pallas masks the ragged tail
    n_elems = rows * LANES
    return pl.pallas_call(
        affine_kernel,
        out_shape=jax.ShapeDtypeStruct((rows, LANES), jnp.float32),
        grid_spec=pltpu.PrefetchScalarGridSpec(
            num_scalar_prefetch=1,        # (a, c) scalars land in SMEM
            grid=grid,
            in_specs=[pl.BlockSpec((block_rows, LANES), lambda i, _ac: (i, 0))],
            out_specs=pl.BlockSpec((block_rows, LANES), lambda i, _ac: (i, 0)),
        ),
        # Donate the x slab (input index 1; index 0 is the scalar-prefetch ac) to the output.
        input_output_aliases={1: 0},
        compiler_params=pltpu.CompilerParams(
            dimension_semantics=("parallel",),   # shard batch tiles across TCs (v7x)
        ),
        cost_estimate=pl.CostEstimate(
            flops=2 * n_elems, transcendentals=0, bytes_accessed=8 * n_elems),
    )(ac, x2d)


def dict_returning_net(x, params, rng_key):
    """x: (N, 1) float32. Returns {'logits': (N, 1), 'something_else': (10,)}."""
    n = x.shape[0]
    ac = _fused_affine_coeffs(params)

    if n < FAST_PATH_MAX_ELEMS:
        # Tiny batch: kernel dispatch + pad-to-(8,128)-slab would dominate; one XLA FMA.
        logits = x.astype(jnp.float32) * ac[0] + ac[1]
    else:
        # Lane-dense packing: batch goes on the lane axis. Pad only to the next
        # 8*128-element multiple (<= 4 KiB), NOT to a block multiple — the grid overhangs
        # the ragged tail instead, so no wasted block of HBM traffic.
        rows = pl.cdiv(n, LANES)
        rows = max(SUBLANES, pl.cdiv(rows, SUBLANES) * SUBLANES)
        n_pad = rows * LANES
        x_flat = x.reshape(-1).astype(jnp.float32)
        if n_pad != n:
            x_flat = jnp.pad(x_flat, (0, n_pad - n))
        y2d = affine_forward_slab(ac, x_flat.reshape(rows, LANES))
        y_flat = y2d.reshape(-1)
        if n_pad != n:
            y_flat = y_flat[:n]
        logits = y_flat.reshape(n, 1)

    # torch.randn(10) equivalent (statistically equivalent; plain-JAX glue, not a kernel)
    something_else = jax.random.normal(rng_key, (10,), dtype=jnp.float32)
    return {"logits": logits, "something_else": something_else}


def init_params(key):
    """Deterministic parameter init matching PyTorch shapes:
       linear1: W (2,1), b (2) ; batchnorm: gamma/beta/mean/var (2) ; linear2: W (1,2), b (1).
       Stored pre-transposed / broadcast-ready."""
    k1, k2, k3, k4, k5, k6 = jax.random.split(key, 6)
    w1 = jax.random.normal(k1, (2, 1), dtype=jnp.float32) * 0.5   # (out=2, in=1)
    b1 = jax.random.normal(k2, (2,), dtype=jnp.float32) * 0.1
    gamma = jnp.ones((2,), dtype=jnp.float32) + 0.1 * jax.random.normal(k3, (2,), dtype=jnp.float32)
    beta = 0.1 * jax.random.normal(k4, (2,), dtype=jnp.float32)
    w2 = jax.random.normal(k5, (1, 2), dtype=jnp.float32) * 0.5   # (out=1, in=2)
    b2 = jax.random.normal(k6, (1,), dtype=jnp.float32) * 0.1
    return {
        "w1t": w1.T,                              # (1, 2)
        "b1": b1.reshape(1, 2),                   # (1, 2)
        "gamma": gamma.reshape(1, 2),             # (1, 2)
        "beta": beta.reshape(1, 2),               # (1, 2)
        "mean": jnp.zeros((1, 2), jnp.float32),   # running mean
        "var": jnp.ones((1, 2), jnp.float32),     # running var
        "w2t": w2.T,                              # (2, 1)
        "b2": b2.reshape(1, 1),                   # (1, 1)
    }


def reference(x, params):
    """Plain-JAX reference of the same forward pass (eval mode), unfused."""
    h = x @ params["w1t"] + params["b1"]
    h = (h - params["mean"]) * jax.lax.rsqrt(params["var"] + 1e-5) * params["gamma"] + params["beta"]
    return h @ params["w2t"] + params["b2"]


if __name__ == "__main__":
    key = jax.random.PRNGKey(0)
    k_x, k_p, k_r, k_x2 = jax.random.split(key, 4)

    params = init_params(k_p)

    # Small batch consistent with the module (Linear(1, 2) input): plain-jnp fast path.
    N_SMALL = 8
    x_small = jax.random.normal(k_x, (N_SMALL, 1), dtype=jnp.float32)
    out_small = dict_returning_net(x_small, params, k_r)
    jax.block_until_ready(out_small)
    assert out_small["logits"].shape == (N_SMALL, 1)
    assert out_small["something_else"].shape == (10,)
    assert jnp.allclose(out_small["logits"], reference(x_small, params), atol=1e-5, rtol=1e-4)

    # Larger batch: exercises the Pallas kernel (2 'parallel' grid blocks, padded tail).
    N_LARGE = 100_000
    x_large = jax.random.normal(k_x2, (N_LARGE, 1), dtype=jnp.float32)
    out_large = dict_returning_net(x_large, params, k_r)
    jax.block_until_ready(out_large)
    assert out_large["logits"].shape == (N_LARGE, 1)
    assert out_large["something_else"].shape == (10,)
    assert jnp.allclose(out_large["logits"], reference(x_large, params), atol=1e-5, rtol=1e-4)

    print("KERNEL_OK")
</pallas_src>

<mosaic_0001>
module attributes {stable_mosaic.version = 11 : i64} {
  func.func @affine_kernel(%arg0: i32, %arg1: memref<2xf32, #tpu.memory_space<smem>>, %arg2: memref<392x128xf32, #tpu.memory_space<vmem>>, %arg3: memref<392x128xf32, #tpu.memory_space<vmem>>) attributes {dimension_semantics = [#tpu.dimension_semantics<parallel>], iteration_bounds = array<i64: 2>, scalar_prefetch = 1 : i64, scratch_operands = 0 : i64, tpu.core_type = #tpu.core_type<tc>, window_params = [{transform_indices = @transform_0, window_bounds = array<i64: 392, 128>}, {transform_indices = @transform_1, window_bounds = array<i64: 392, 128>}]} {
    %c0 = arith.constant 0 : index
    %c0_0 = arith.constant 0 : index
    %0 = vector.load %arg2[%c0, %c0_0] : memref<392x128xf32, #tpu.memory_space<vmem>>, vector<392x128xf32>
    %c0_1 = arith.constant 0 : index
    %1 = memref.load %arg1[%c0_1] : memref<2xf32, #tpu.memory_space<smem>>
    %2 = vector.broadcast %1 : f32 to vector<392x128xf32>
    %3 = arith.mulf %0, %2 : vector<392x128xf32>
    %c1 = arith.constant 1 : index
    %4 = memref.load %arg1[%c1] : memref<2xf32, #tpu.memory_space<smem>>
    %5 = vector.broadcast %4 : f32 to vector<392x128xf32>
    %6 = arith.addf %3, %5 : vector<392x128xf32>
    %c0_2 = arith.constant 0 : index
    %c0_3 = arith.constant 0 : index
    %7 = vector.load %arg3[%c0_2, %c0_3] : memref<392x128xf32, #tpu.memory_space<vmem>>, vector<392x128xf32>
    tpu.vector_store %arg3[%c0_2, %c0_3], %6 {strides = array<i32>} : memref<392x128xf32, #tpu.memory_space<vmem>>, vector<392x128xf32>,
    return
  }
  func.func @transform_0(%arg0: i32, %arg1: memref<2xf32, #tpu.memory_space<smem>>) -> (i32, i32) {
    %c0_i32 = arith.constant 0 : i32
    %c0_i32_0 = arith.constant 0 : i32
    return %arg0, %c0_i32 : i32, i32
  }
  func.func @transform_1(%arg0: i32, %arg1: memref<2xf32, #tpu.memory_space<smem>>) -> (i32, i32) {
    %c0_i32 = arith.constant 0 : i32
    %c0_i32_0 = arith.constant 0 : i32
    return %arg0, %c0_i32 : i32, i32
  }
}

</mosaic_0001>

<llo_original>
// kernel: tpu_custom_call.1
$region0: #{tpu_custom_call.1}
  #allocation0 [shape = 'u32[]', space=smem, size = 0x4, offset = 0x4, fixed_abs, tag = 'smem constant byte address 0x4 - core index']
  #allocation1 [shape = 'u32[72,128]{1,0:T(1,128)}', space=vmem, size = 0x9000, scoped, tag = 'internal scratch']
  #allocation2 [shape = 's32[1]{0}', space=sflag, size = 0x4, scoped, tag = 'scoped memory for tpu_custom_call.1']
  #allocation3 [shape = 'u8[512]{0}', space=smem, size = 0x200, scoped, tag = 'prefetched SMEM operand 0']
  %s0 = inlined_call_operand.vmem [shape: f32[2], index: 0, kind: input, shape index: {}]
  %s1 = inlined_call_operand.hbm [shape: f32[784,128], index: 1, kind: input, shape index: {}, may-alias: {1,2}]
  %s2 = inlined_call_operand.hbm [shape: f32[784,128], index: 2, kind: output, shape index: {}, may-alias: {1,2}]
  %s3 = sld [smem:[#allocation0]]
  $region41: #{tpu_custom_call.1} parent=0
    _
  %s5 = ssub.s32 1, %s3
  %s6 = scalar_select 0, %s5, %s3
  %s8 = sshll.u32 %s0, 4
  %s9 = int_to_ptr.vmem [resolvable:$true] %s8
  %11 = dma.vmem_to_smem %s9, 16, [#allocation3], [#allocation2]
  %13 = dma.done [#allocation2], 16
  %14 = sfence
  $region1: #{tpu_custom_call.1} parent=0
    #allocation4 [shape = 'u8[401408]{0}', space=vmem, size = 0x62000, scoped, tag = 'input window, operand 1']
    #allocation5 [shape = 's32[2]{0}', space=sflag, size = 0x8, scoped, tag = 'scoped memory for tpu_custom_call.1']
    #allocation6 [shape = 's32[2]{0}', space=sflag, size = 0x8, scoped, tag = 'scoped memory for tpu_custom_call.1']
    #allocation7 [shape = 'u8[401408]{0}', space=vmem, size = 0x62000, scoped, tag = 'output window, operand 0']
    %15 = vsyncpa [#allocation5], 0
    %s16 = scalar_lea.sflag [#allocation5], 1
    %17 = vsyncpa %s16, 0
    %18 = vsyncpa [#allocation6], 0
    %s19 = scalar_lea.sflag [#allocation6], 1
    %20 = vsyncpa %s19, 0
    loop: start=0, step=1, limit=4
    $region2: #{tpu_custom_call.1} parent=1 // loop_pre_header
      _
    $region3: #{tpu_custom_call.1} parent=1 // loop_header
      %s22 = sphi 0, %s26
      %p23 = scmp.ge.s32.totalorder %s22, 4
      %s32 = sphi 0, %s34
      %s35 = sphi 0, %s32
      %s36 = sphi 0, %s35
      %s52 = sphi 0, %s36
      %s58 = sphi 0, %s60
      %s61 = sphi 0, %s58
      %s62 = sphi 0, %s61
      %s78 = sphi 0, %s62
    $region4: #{tpu_custom_call.1} parent=1 // loop_header_branch
      %25 = sbr.rel (%p23) target = $region8
    $region5: #{tpu_custom_call.1} parent=1 // loop_body
      %s27 = ssub.s32 %s22, 1
      %s28 = ssub.s32 %s22, 2
      %s29 = sadd.s32 %s22, 1
      %s30 = ssub.s32 %s22, %s29
      %p31 = scmp.eq.s32.totalorder %s30, 0
      %s33 = sadd.s32 %s32, 1
      %s34 = scalar_select %p31, %s32, %s33
      %p37 = pneg %p31
      %p38 = scmp.eq.s32.totalorder %s22, 1
      %p39 = por %p37, %p38
      %p40 = scmp.ne.s32.totalorder %s32, %s35
      %p41 = scmp.eq.s32.totalorder %s22, 0
      %p42 = por %p40, %p41
      %p43 = scmp.ne.s32.totalorder %s32, %s35
      %p44 = scmp.eq.s32.totalorder %s27, 1
      %p45 = por %p43, %p44
      %p46 = scmp.ne.s32.totalorder %s35, %s36
      %p47 = scmp.eq.s32.totalorder %s27, 0
      %p48 = por %p46, %p47
      %p49 = scmp.ne.s32.totalorder %s35, %s36
      %p50 = scmp.eq.s32.totalorder %s28, 1
      %p51 = por %p49, %p50
      %p53 = scmp.ne.s32.totalorder %s36, %s52
      %p54 = scmp.eq.s32.totalorder %s28, 0
      %p55 = por %p53, %p54
      %s56 = ssub.s32 %s22, %s29
      %p57 = scmp.eq.s32.totalorder %s56, 0
      %s59 = sadd.s32 %s58, 1
      %s60 = scalar_select %p57, %s58, %s59
      %p63 = pneg %p57
      %p64 = scmp.eq.s32.totalorder %s22, 1
      %p65 = por %p63, %p64
      %p66 = scmp.ne.s32.totalorder %s58, %s61
      %p67 = scmp.eq.s32.totalorder %s22, 0
      %p68 = por %p66, %p67
      %p69 = scmp.ne.s32.totalorder %s58, %s61
      %p70 = scmp.eq.s32.totalorder %s27, 1
      %p71 = por %p69, %p70
      %p72 = scmp.ne.s32.totalorder %s61, %s62
      %p73 = scmp.eq.s32.totalorder %s27, 0
      %p74 = por %p72, %p73
      %p75 = scmp.ne.s32.totalorder %s61, %s62
      %p76 = scmp.eq.s32.totalorder %s28, 1
      %p77 = por %p75, %p76
      %p79 = scmp.ne.s32.totalorder %s62, %s78
      %p80 = scmp.eq.s32.totalorder %s28, 0
      %p81 = por %p79, %p80
      %p82 = scmp.le.s32.totalorder 1, %s22
      %p83 = scmp.lt.s32.totalorder %s22, 3
      %p84 = pnand %p82, %p83
      %p85 = pneg %p84
      // Predicated region
      $region9: #{tpu_custom_call.1} parent=5 // pred_check
        _
      $region10: #{tpu_custom_call.1} parent=5 // pred_check_branch
        %87 = sbr.rel (%p84) target = $region12
      $region11: #{tpu_custom_call.1} parent=5 // pred_region
        %s88 = ssub.s32 %s22, 1
      $region12: #{tpu_custom_call.1} parent=5 // pred_fallthru
        _
      %p89 = scmp.lt.s32.totalorder %s22, 2
      // Predicated region
      $region13: #{tpu_custom_call.1} parent=5 // pred_check
        %p90 = pneg %p89
      $region14: #{tpu_custom_call.1} parent=5 // pred_check_branch
        %92 = sbr.rel (%p90) target = $region16
      $region15: #{tpu_custom_call.1} parent=5 // pred_region
        // Predicated region
        $region17: #{tpu_custom_call.1} parent=15 // pred_check
          %p93 = pneg %p42
        $region18: #{tpu_custom_call.1} parent=15 // pred_check_branch
          %95 = sbr.rel (%p93) target = $region20
        $region19: #{tpu_custom_call.1} parent=15 // pred_region
          %s96 = sand.u32 %s32, 1
          %s97 = scalar_lea.sflag [#allocation5], %s96
          %s98 = sand.u32 %s32, 1
          %s99 = smul.addr %s98, 392
          %s100 = scalar_lea.vmem [#allocation4], %s99
          %s101 = smul.u32 49, %s22
          %103 = vsyncadd %s97, 0
          %s104 = smul.addr %s101, 8
          %s105 = scalar_lea.hbm %s1, %s104
          %s106 = sshll.u32 %s105, 4
          %s107 = int_to_ptr.hbm [resolvable:$true] %s106
          %s108 = sshll.u32 %s100, 4
          %s109 = int_to_ptr.vmem [resolvable:$true] %s108
          %114 = dma.hbm_to_vmem [thread:$0]  %s107, 6272, %s109, %s97, 128, 128, 8
        $region20: #{tpu_custom_call.1} parent=15 // pred_fallthru
          _
      $region16: #{tpu_custom_call.1} parent=5 // pred_fallthru
        _
      %p115 = scmp.le.s32.totalorder 1, %s22
      %p116 = scmp.lt.s32.totalorder %s22, 3
      %p117 = pnand %p115, %p116
      %p118 = pneg %p117
      // Predicated region
      $region21: #{tpu_custom_call.1} parent=5 // pred_check
        _
      $region22: #{tpu_custom_call.1} parent=5 // pred_check_branch
        %120 = sbr.rel (%p117) target = $region24
      $region23: #{tpu_custom_call.1} parent=5 // pred_region
        %s121 = ssub.s32 %s22, 1
        %s122 = sand.u32 %s35, 1
        %s123 = scalar_lea.sflag [#allocation5], %s122
        %s124 = sand.u32 %s35, 1
        %s125 = smul.addr %s124, 392
        %s126 = scalar_lea.vmem [#allocation4], %s125
        // Predicated region
        $region25: #{tpu_custom_call.1} parent=23 // pred_check
          %p127 = pneg %p48
        $region26: #{tpu_custom_call.1} parent=23 // pred_check_branch
          %129 = sbr.rel (%p127) target = $region28
        $region27: #{tpu_custom_call.1} parent=23 // pred_region
          %131 = dma.done %s123, 6272
        $region28: #{tpu_custom_call.1} parent=23 // pred_fallthru
          _
        %s132 = sand.u32 %s35, 1
        %s133 = scalar_lea.sflag [#allocation5], %s132
        %s134 = sand.u32 %s35, 1
        %s135 = smul.addr %s134, 392
        %s136 = scalar_lea.vmem [#allocation4], %s135
        %p137 = pneg %p48
        %p138 = pneg %p45
        %p139 = pneg %p74
        %p140 = pneg %p71
        %s141 = sand.u32 %s61, 1
        %s142 = scalar_lea.sflag [#allocation6], %s141
        %s143 = sand.u32 %s61, 1
        %s144 = smul.addr %s143, 392
        %s145 = scalar_lea.vmem [#allocation7], %s144
        %s146 = smul.u32 49, %s27
        %s147 = smul.u32 49, %s27
        %v148 = vld [vmem:[%s126] sm:$0xff]
        %v149 = vld [vmem:[%s126 + $0x8] sm:$0xff]
        %v150 = vld [vmem:[%s126 + $0x10] sm:$0xff]
        %v151 = vld [vmem:[%s126 + $0x18] sm:$0xff]
        %v152 = vld [vmem:[%s126 + $0x20] sm:$0xff]
        %v153 = vld [vmem:[%s126 + $0x28] sm:$0xff]
        %v154 = vld [vmem:[%s126 + $0x30] sm:$0xff]
        %v155 = vld [vmem:[%s126 + $0x38] sm:$0xff]
        %v156 = vld [vmem:[%s126 + $0x40] sm:$0xff]
        %v157 = vld [vmem:[%s126 + $0x48] sm:$0xff]
        %v158 = vld [vmem:[%s126 + $0x50] sm:$0xff]
        %v159 = vld [vmem:[%s126 + $0x58] sm:$0xff]
        %v160 = vld [vmem:[%s126 + $0x60] sm:$0xff]
        %v161 = vld [vmem:[%s126 + $0x68] sm:$0xff]
        %v162 = vld [vmem:[%s126 + $0x70] sm:$0xff]
        %v163 = vld [vmem:[%s126 + $0x78] sm:$0xff]
        %v164 = vld [vmem:[%s126 + $0x80] sm:$0xff]
        %v165 = vld [vmem:[%s126 + $0x88] sm:$0xff]
        %v166 = vld [vmem:[%s126 + $0x90] sm:$0xff]
        %v167 = vld [vmem:[%s126 + $0x98] sm:$0xff]
        %v168 = vld [vmem:[%s126 + $0xa0] sm:$0xff]
        %v169 = vld [vmem:[%s126 + $0xa8] sm:$0xff]
        %v170 = vld [vmem:[%s126 + $0xb0] sm:$0xff]
        %v171 = vld [vmem:[%s126 + $0xb8] sm:$0xff]
        %v172 = vld [vmem:[%s126 + $0xc0] sm:$0xff]
        %v173 = vld [vmem:[%s126 + $0xc8] sm:$0xff]
        %v174 = vld [vmem:[%s126 + $0xd0] sm:$0xff]
        %v175 = vld [vmem:[%s126 + $0xd8] sm:$0xff]
        %v176 = vld [vmem:[%s126 + $0xe0] sm:$0xff]
        %v177 = vld [vmem:[%s126 + $0xe8] sm:$0xff]
        %v178 = vld [vmem:[%s126 + $0xf0] sm:$0xff]
        %v179 = vld [vmem:[%s126 + $0xf8] sm:$0xff]
        %v180 = vld [vmem:[%s126 + $0x100] sm:$0xff]
        %v181 = vld [vmem:[%s126 + $0x108] sm:$0xff]
        %v182 = vld [vmem:[%s126 + $0x110] sm:$0xff]
        %v183 = vld [vmem:[%s126 + $0x118] sm:$0xff]
        %v184 = vld [vmem:[%s126 + $0x120] sm:$0xff]
        %v185 = vld [vmem:[%s126 + $0x128] sm:$0xff]
        %v186 = vld [vmem:[%s126 + $0x130] sm:$0xff]
        %v187 = vld [vmem:[%s126 + $0x138] sm:$0xff]
        %v188 = vld [vmem:[%s126 + $0x140] sm:$0xff]
        %v189 = vld [vmem:[%s126 + $0x148] sm:$0xff]
        %v190 = vld [vmem:[%s126 + $0x150] sm:$0xff]
        %v191 = vld [vmem:[%s126 + $0x158] sm:$0xff]
        %v192 = vld [vmem:[%s126 + $0x160] sm:$0xff]
        %v193 = vld [vmem:[%s126 + $0x168] sm:$0xff]
        %v194 = vld [vmem:[%s126 + $0x170] sm:$0xff]
        %v195 = vld [vmem:[%s126 + $0x178] sm:$0xff]
        %v196 = vld [vmem:[%s126 + $0x180] sm:$0xff]
        %s197 = sld [smem:[#allocation3]]
        %v198 = vstv %s197
        %v199 = vmul.f32 %v148, %v198
        %v200 = vmul.f32 %v149, %v198
        %v201 = vmul.f32 %v150, %v198
        %v202 = vmul.f32 %v151, %v198
        %v203 = vmul.f32 %v152, %v198
        %v204 = vmul.f32 %v153, %v198
        %v205 = vmul.f32 %v154, %v198
        %v206 = vmul.f32 %v155, %v198
        %v207 = vmul.f32 %v156, %v198
        %v208 = vmul.f32 %v157, %v198
        %v209 = vmul.f32 %v158, %v198
        %v210 = vmul.f32 %v159, %v198
        %v211 = vmul.f32 %v160, %v198
        %v212 = vmul.f32 %v161, %v198
        %v213 = vmul.f32 %v162, %v198
        %v214 = vmul.f32 %v163, %v198
        %v215 = vmul.f32 %v164, %v198
        %v216 = vmul.f32 %v165, %v198
        %v217 = vmul.f32 %v166, %v198
        %v218 = vmul.f32 %v167, %v198
        %v219 = vmul.f32 %v168, %v198
        %v220 = vmul.f32 %v169, %v198
        %v221 = vmul.f32 %v170, %v198
        %v222 = vmul.f32 %v171, %v198
        %v223 = vmul.f32 %v172, %v198
        %v224 = vmul.f32 %v173, %v198
        %v225 = vmul.f32 %v174, %v198
        %v226 = vmul.f32 %v175, %v198
        %v227 = vmul.f32 %v176, %v198
        %v228 = vmul.f32 %v177, %v198
        %v229 = vmul.f32 %v178, %v198
        %v230 = vmul.f32 %v179, %v198
        %v231 = vmul.f32 %v180, %v198
        %v232 = vmul.f32 %v181, %v198
        %v233 = vmul.f32 %v182, %v198
        %v234 = vmul.f32 %v183, %v198
        %v235 = vmul.f32 %v184, %v198
        %v236 = vmul.f32 %v185, %v198
        %v237 = vmul.f32 %v186, %v198
        %v238 = vmul.f32 %v187, %v198
        %v239 = vmul.f32 %v188, %v198
        %v240 = vmul.f32 %v189, %v198
        %v241 = vmul.f32 %v190, %v198
        %v242 = vmul.f32 %v191, %v198
        %v243 = vmul.f32 %v192, %v198
        %v244 = vmul.f32 %v193, %v198
        %v245 = vmul.f32 %v194, %v198
        %v246 = vmul.f32 %v195, %v198
        %v247 = vmul.f32 %v196, %v198
        %s248 = sld [smem:[#allocation3 + $0x1]]
        %v249 = vstv %s248
        %v250 = vadd.f32 %v199, %v249
        %v251 = vadd.f32 %v200, %v249
        %v252 = vadd.f32 %v201, %v249
        %v253 = vadd.f32 %v202, %v249
        %v254 = vadd.f32 %v203, %v249
        %v255 = vadd.f32 %v204, %v249
        %v256 = vadd.f32 %v205, %v249
        %v257 = vadd.f32 %v206, %v249
        %v258 = vadd.f32 %v207, %v249
        %v259 = vadd.f32 %v208, %v249
        %v260 = vadd.f32 %v209, %v249
        %v261 = vadd.f32 %v210, %v249
        %v262 = vadd.f32 %v211, %v249
        %v263 = vadd.f32 %v212, %v249
        %v264 = vadd.f32 %v213, %v249
        %v265 = vadd.f32 %v214, %v249
        %v266 = vadd.f32 %v215, %v249
        %v267 = vadd.f32 %v216, %v249
        %v268 = vadd.f32 %v217, %v249
        %v269 = vadd.f32 %v218, %v249
        %v270 = vadd.f32 %v219, %v249
        %v271 = vadd.f32 %v220, %v249
        %v272 = vadd.f32 %v221, %v249
        %v273 = vadd.f32 %v222, %v249
        %v274 = vadd.f32 %v223, %v249
        %v275 = vadd.f32 %v224, %v249
        %v276 = vadd.f32 %v225, %v249
        %v277 = vadd.f32 %v226, %v249
        %v278 = vadd.f32 %v227, %v249
        %v279 = vadd.f32 %v228, %v249
        %v280 = vadd.f32 %v229, %v249
        %v281 = vadd.f32 %v230, %v249
        %v282 = vadd.f32 %v231, %v249
        %v283 = vadd.f32 %v232, %v249
        %v284 = vadd.f32 %v233, %v249
        %v285 = vadd.f32 %v234, %v249
        %v286 = vadd.f32 %v235, %v249
        %v287 = vadd.f32 %v236, %v249
        %v288 = vadd.f32 %v237, %v249
        %v289 = vadd.f32 %v238, %v249
        %v290 = vadd.f32 %v239, %v249
        %v291 = vadd.f32 %v240, %v249
        %v292 = vadd.f32 %v241, %v249
        %v293 = vadd.f32 %v242, %v249
        %v294 = vadd.f32 %v243, %v249
        %v295 = vadd.f32 %v244, %v249
        %v296 = vadd.f32 %v245, %v249
        %v297 = vadd.f32 %v246, %v249
        %v298 = vadd.f32 %v247, %v249
        %299 = vst [vmem:[%s145] sm:$0xff] %v250
        %300 = vst [vmem:[%s145 + $0x8] sm:$0xff] %v251
        %301 = vst [vmem:[%s145 + $0x10] sm:$0xff] %v252
        %302 = vst [vmem:[%s145 + $0x18] sm:$0xff] %v253
        %303 = vst [vmem:[%s145 + $0x20] sm:$0xff] %v254
        %304 = vst [vmem:[%s145 + $0x28] sm:$0xff] %v255
        %305 = vst [vmem:[%s145 + $0x30] sm:$0xff] %v256
        %306 = vst [vmem:[%s145 + $0x38] sm:$0xff] %v257
        %307 = vst [vmem:[%s145 + $0x40] sm:$0xff] %v258
        %308 = vst [vmem:[%s145 + $0x48] sm:$0xff] %v259
        %309 = vst [vmem:[%s145 + $0x50] sm:$0xff] %v260
        %310 = vst [vmem:[%s145 + $0x58] sm:$0xff] %v261
        %311 = vst [vmem:[%s145 + $0x60] sm:$0xff] %v262
        %312 = vst [vmem:[%s145 + $0x68] sm:$0xff] %v263
        %313 = vst [vmem:[%s145 + $0x70] sm:$0xff] %v264
        %314 = vst [vmem:[%s145 + $0x78] sm:$0xff] %v265
        %315 = vst [vmem:[%s145 + $0x80] sm:$0xff] %v266
        %316 = vst [vmem:[%s145 + $0x88] sm:$0xff] %v267
        %317 = vst [vmem:[%s145 + $0x90] sm:$0xff] %v268
        %318 = vst [vmem:[%s145 + $0x98] sm:$0xff] %v269
        %319 = vst [vmem:[%s145 + $0xa0] sm:$0xff] %v270
        %320 = vst [vmem:[%s145 + $0xa8] sm:$0xff] %v271
        %321 = vst [vmem:[%s145 + $0xb0] sm:$0xff] %v272
        %322 = vst [vmem:[%s145 + $0xb8] sm:$0xff] %v273
        %323 = vst [vmem:[%s145 + $0xc0] sm:$0xff] %v274
        %324 = vst [vmem:[%s145 + $0xc8] sm:$0xff] %v275
        %325 = vst [vmem:[%s145 + $0xd0] sm:$0xff] %v276
        %326 = vst [vmem:[%s145 + $0xd8] sm:$0xff] %v277
        %327 = vst [vmem:[%s145 + $0xe0] sm:$0xff] %v278
        %328 = vst [vmem:[%s145 + $0xe8] sm:$0xff] %v279
        %329 = vst [vmem:[%s145 + $0xf0] sm:$0xff] %v280
        %330 = vst [vmem:[%s145 + $0xf8] sm:$0xff] %v281
        %331 = vst [vmem:[%s145 + $0x100] sm:$0xff] %v282
        %332 = vst [vmem:[%s145 + $0x108] sm:$0xff] %v283
        %333 = vst [vmem:[%s145 + $0x110] sm:$0xff] %v284
        %334 = vst [vmem:[%s145 + $0x118] sm:$0xff] %v285
        %335 = vst [vmem:[%s145 + $0x120] sm:$0xff] %v286
        %336 = vst [vmem:[%s145 + $0x128] sm:$0xff] %v287
        %337 = vst [vmem:[%s145 + $0x130] sm:$0xff] %v288
        %338 = vst [vmem:[%s145 + $0x138] sm:$0xff] %v289
        %339 = vst [vmem:[%s145 + $0x140] sm:$0xff] %v290
        %340 = vst [vmem:[%s145 + $0x148] sm:$0xff] %v291
        %341 = vst [vmem:[%s145 + $0x150] sm:$0xff] %v292
        %342 = vst [vmem:[%s145 + $0x158] sm:$0xff] %v293
        %343 = vst [vmem:[%s145 + $0x160] sm:$0xff] %v294
        %344 = vst [vmem:[%s145 + $0x168] sm:$0xff] %v295
        %345 = vst [vmem:[%s145 + $0x170] sm:$0xff] %v296
        %346 = vst [vmem:[%s145 + $0x178] sm:$0xff] %v297
        %347 = vst [vmem:[%s145 + $0x180] sm:$0xff] %v298
        %s348 = sand.u32 %s61, 1
        %s349 = scalar_lea.sflag [#allocation6], %s348
        %s350 = sand.u32 %s61, 1
        %s351 = smul.addr %s350, 392
        %s352 = scalar_lea.vmem [#allocation7], %s351
        // Predicated region
        $region29: #{tpu_custom_call.1} parent=23 // pred_check
          %p353 = pneg %p71
        $region30: #{tpu_custom_call.1} parent=23 // pred_check_branch
          %355 = sbr.rel (%p353) target = $region32
        $region31: #{tpu_custom_call.1} parent=23 // pred_region
          %s356 = smul.u32 49, %s27
          %358 = vsyncadd %s349, 0
          %s359 = smul.addr %s356, 8
          %s360 = scalar_lea.hbm %s2, %s359
          %s361 = sshll.u32 %s352, 4
          %s362 = int_to_ptr.vmem [resolvable:$true] %s361
          %s363 = sshll.u32 %s360, 4
          %s364 = int_to_ptr.hbm [resolvable:$true] %s363
          %369 = dma.vmem_to_hbm [thread:$0]  %s362, 6272, %s364, %s349, 128, 128, 8
        $region32: #{tpu_custom_call.1} parent=23 // pred_fallthru
          _
      $region24: #{tpu_custom_call.1} parent=5 // pred_fallthru
        _
      %p370 = scmp.le.s32.totalorder 2, %s22
      // Predicated region
      $region33: #{tpu_custom_call.1} parent=5 // pred_check
        %p371 = pneg %p370
      $region34: #{tpu_custom_call.1} parent=5 // pred_check_branch
        %373 = sbr.rel (%p371) target = $region36
      $region35: #{tpu_custom_call.1} parent=5 // pred_region
        %s374 = ssub.s32 %s22, 2
        // Predicated region
        $region37: #{tpu_custom_call.1} parent=35 // pred_check
          %p375 = pneg %p77
        $region38: #{tpu_custom_call.1} parent=35 // pred_check_branch
          %377 = sbr.rel (%p375) target = $region40
        $region39: #{tpu_custom_call.1} parent=35 // pred_region
          %s378 = sand.u32 %s62, 1
          %s379 = scalar_lea.sflag [#allocation6], %s378
          %s380 = sand.u32 %s62, 1
          %s381 = smul.addr %s380, 392
          %s382 = scalar_lea.vmem [#allocation7], %s381
          %384 = dma.done %s379, 6272
        $region40: #{tpu_custom_call.1} parent=35 // pred_fallthru
          _
      $region36: #{tpu_custom_call.1} parent=5 // pred_fallthru
        _
    $region6: #{tpu_custom_call.1} parent=1 // loop_footer
      %s26 = sadd.s32 1, %s22
    $region7: #{tpu_custom_call.1} parent=1 // loop_footer_branch
      %21 = sbr.rel target = $region3
    $region8: #{tpu_custom_call.1} parent=1 // loop_exit
      _
    %385 = vsyncpa [#allocation5], 1
    %s386 = scalar_lea.sflag [#allocation5], 1
    %387 = vsyncpa %s386, 1
    %388 = vsyncpa [#allocation6], 1
    %s389 = scalar_lea.sflag [#allocation6], 1
    %390 = vsyncpa %s389, 1

</llo_original>
